<compile_context>
chip_gen: v7x
topology: tpu7x:2x2x1
jax: 0.10.0
libtpu: 0.0.40
codegen_flags: <defaults>
</compile_context>

<pallas_src>
import functools

import jax
import jax.numpy as jnp
from jax.experimental import pallas as pl
from jax.experimental.pallas import tpu as pltpu

# spacegraph's get_activation_function('leakyrelu') uses negative_slope=0.2
LEAKY_SLOPE = 0.2


def _attn_kernel(qg_ref, key_ref, spa_ref, avqg_ref, avk_ref, avs_ref, o_ref,
                 *, num_attn):
    # one grid step == one block of Bb batch elements
    Bb, N, Dk = key_ref.shape
    Ds = spa_ref.shape[2]
    K = avk_ref.shape[1]

    key = key_ref[...]                          # (Bb, N, Dk)
    spa = spa_ref[...]                          # (Bb, N, Ds)

    # einsum('bnd,dk->bnk') over the (virtual) concat
    #   concat = [query_expand | key | spa | g_spa_expand]
    # distributed over its sources (concat never materialized).
    # Context-dependent terms: flattened (Bb*N, D) x (D, K) MXU passes.
    s = (jnp.dot(key.reshape(Bb * N, Dk), avk_ref[...],
                 preferred_element_type=jnp.float32)
         + jnp.dot(spa.reshape(Bb * N, Ds), avs_ref[...],
                   preferred_element_type=jnp.float32))
    s = s.reshape(Bb, N, K)

    # Per-batch terms (constant over N) from query + global-spa embeddings.
    bias = jnp.dot(qg_ref[...], avqg_ref[...],
                   preferred_element_type=jnp.float32)      # (Bb, K)
    s = s + bias[:, None, :]                                # (Bb, N, K)

    # LeakyReLU, then softmax over the context-point dim (torch dim=1 -> axis N)
    s = jnp.where(s > 0, s, LEAKY_SLOPE * s)
    m = jnp.max(s, axis=1, keepdims=True)       # (Bb, 1, K)
    e = jnp.exp(s - m)
    l = jnp.sum(e, axis=1, keepdims=True)       # (Bb, 1, K)
    inv_l = pl.reciprocal(l, approx=True)       # EUP slot (otherwise idle)

    # Head-mean folded in:  w[b,n] = (1/K) * sum_k attn[b,n,k]
    w = jnp.sum(e * inv_l, axis=2) * (1.0 / num_attn)        # (Bb, N)

    # combined[b,:] = sum_n w[b,n] * key[b,n,:]
    #   == sum over heads of (attn^T @ key), without the transpose or the
    #      (K, Dk) intermediate.  VPU multiply + sublane reduce.
    combined = jnp.sum(w[:, :, None] * key.astype(jnp.float32), axis=1)  # (Bb, Dk)

    o_ref[...] = jax.nn.sigmoid(combined).astype(o_ref.dtype)


def golbal_position_intersect_concat_attention(
    key_embeds, key_spa_embeds, query_g_spa_embeds, query_embed, atten_vecs,
    *, block_b=512):
    """Pallas forward. Returns [B, key_dim]."""
    B, N, Dk = key_embeds.shape
    Ds = key_spa_embeds.shape[2]
    Dg = query_g_spa_embeds.shape[1]
    Dq = query_embed.shape[1]
    Dtot, K = atten_vecs.shape
    assert Dtot == Dq + Dk + Ds + Dg

    # Batch block: multiple of 8 so the (Bb, D) blocks and the (Bb, Dk) output
    # satisfy the (8, 128) sublane rule; capped by block_b.
    Bb = max(8, min(block_b, B))
    Bb = ((Bb + 7) // 8) * 8
    Bp = pl.cdiv(B, Bb) * Bb

    if Bp != B:
        pad = Bp - B
        key_embeds = jnp.pad(key_embeds, ((0, pad), (0, 0), (0, 0)))
        key_spa_embeds = jnp.pad(key_spa_embeds, ((0, pad), (0, 0), (0, 0)))
        query_g_spa_embeds = jnp.pad(query_g_spa_embeds, ((0, pad), (0, 0)))
        query_embed = jnp.pad(query_embed, ((0, pad), (0, 0)))

    # Per-batch sources (constant over N) fused into one small tensor / matmul.
    qg = jnp.concatenate([query_embed, query_g_spa_embeds], axis=1)   # (Bp, Dq+Dg)

    # Pre-slice the attention weight matrix into per-source tiles (static shapes).
    av_q = atten_vecs[:Dq]                                   # (Dq, K)
    av_k = atten_vecs[Dq:Dq + Dk]                            # (Dk, K)
    av_s = atten_vecs[Dq + Dk:Dq + Dk + Ds]                  # (Ds, K)
    av_g = atten_vecs[Dq + Dk + Ds:]                         # (Dg, K)
    av_qg = jnp.concatenate([av_q, av_g], axis=0)            # (Dq+Dg, K)

    # VMEM budget: double-buffered in/out blocks + resident weights + headroom.
    itemsize = jnp.dtype(key_embeds.dtype).itemsize
    block_bytes = Bb * (N * (Dk + Ds) + (Dq + Dg) + Dk) * itemsize
    vmem_limit = int(min(max(4 * block_bytes + (1 << 20), 16 << 20), 48 << 20))

    kernel = functools.partial(_attn_kernel, num_attn=K)
    out = pl.pallas_call(
        kernel,
        out_shape=jax.ShapeDtypeStruct((Bp, Dk), key_embeds.dtype),
        grid_spec=pltpu.PrefetchScalarGridSpec(
            num_scalar_prefetch=0,
            grid=(Bp // Bb,),
            in_specs=[
                pl.BlockSpec((Bb, Dq + Dg), lambda b: (b, 0)),   # [query | g_spa]
                pl.BlockSpec((Bb, N, Dk), lambda b: (b, 0, 0)),  # key_embeds
                pl.BlockSpec((Bb, N, Ds), lambda b: (b, 0, 0)),  # key_spa_embeds
                pl.BlockSpec((Dq + Dg, K), lambda b: (0, 0)),    # av[query|g_spa]
                pl.BlockSpec((Dk, K), lambda b: (0, 0)),         # av[key]
                pl.BlockSpec((Ds, K), lambda b: (0, 0)),         # av[spa]
            ],
            out_specs=pl.BlockSpec((Bb, Dk), lambda b: (b, 0)),
        ),
        compiler_params=pltpu.CompilerParams(
            dimension_semantics=("parallel",),
            vmem_limit_bytes=vmem_limit),
    )(qg, key_embeds, key_spa_embeds, av_qg, av_k, av_s)
    return out[:B]


def reference_forward(key_embeds, key_spa_embeds, query_g_spa_embeds, query_embed,
                      atten_vecs):
    """Pure-JAX mirror of the PyTorch forward (for correctness check)."""
    B, N, _ = key_embeds.shape
    K = atten_vecs.shape[1]
    qe = jnp.broadcast_to(query_embed[:, None, :], (B, N, query_embed.shape[1]))
    ge = jnp.broadcast_to(query_g_spa_embeds[:, None, :],
                          (B, N, query_g_spa_embeds.shape[1]))
    concat = jnp.concatenate([qe, key_embeds, key_spa_embeds, ge], axis=2)
    attn = jnp.einsum('bnd,dk->bnk', concat, atten_vecs)
    attn = jnp.where(attn > 0, attn, LEAKY_SLOPE * attn)
    attn = jax.nn.softmax(attn, axis=1)
    attn = jnp.transpose(attn, (0, 2, 1))
    combined = jnp.einsum('bkn,bnd->bkd', attn, key_embeds)
    combined = jnp.sum(combined, axis=1) * (1.0 / K)
    return jax.nn.sigmoid(combined)


if __name__ == "__main__":
    # small deterministic shapes consistent with the module;
    # B=12 with block_b=8 exercises the batch-blocked path (grid=2) + padding.
    B = 12           # batch_size
    N = 8            # num_context_pt
    Dq = Dk = 32     # query_dim == key_dim (have_query_embed=True)
    Ds = 16          # spa_embed_dim
    Dg = 16          # g_spa_embed_dim
    K = 2            # num_attn

    key = jax.random.PRNGKey(0)
    k1, k2, k3, k4, k5 = jax.random.split(key, 5)

    key_embeds = jax.random.normal(k1, (B, N, Dk), dtype=jnp.float32)
    key_spa_embeds = jax.random.normal(k2, (B, N, Ds), dtype=jnp.float32)
    query_g_spa_embeds = jax.random.normal(k3, (B, Dg), dtype=jnp.float32)
    query_embed = jax.random.normal(k4, (B, Dq), dtype=jnp.float32)

    # deterministic xavier_uniform_ init for atten_vecs [Dq+Dk+Ds+Dg, K]
    Dtot = Dq + Dk + Ds + Dg
    bound = (6.0 / (Dtot + K)) ** 0.5
    atten_vecs = jax.random.uniform(
        k5, (Dtot, K), minval=-bound, maxval=bound, dtype=jnp.float32)

    out = golbal_position_intersect_concat_attention(
        key_embeds, key_spa_embeds, query_g_spa_embeds, query_embed, atten_vecs,
        block_b=8)
    out = jax.block_until_ready(out)

    ref = reference_forward(
        key_embeds, key_spa_embeds, query_g_spa_embeds, query_embed, atten_vecs)
    assert out.shape == (B, Dk)
    # tolerance accommodates the approximate (EUP) reciprocal in the softmax
    # denominator; still far below any real bug.
    assert jnp.allclose(out, ref, rtol=1e-3, atol=1e-3), "mismatch vs reference"

    print("KERNEL_OK")
</pallas_src>

<mosaic_0001>
module attributes {stable_mosaic.version = 11 : i64} {
  func.func @_attn_kernel(%arg0: i32, %arg1: memref<8x48xf32, #tpu.memory_space<vmem>>, %arg2: memref<8x8x32xf32, #tpu.memory_space<vmem>>, %arg3: memref<8x8x16xf32, #tpu.memory_space<vmem>>, %arg4: memref<48x2xf32, #tpu.memory_space<vmem>>, %arg5: memref<32x2xf32, #tpu.memory_space<vmem>>, %arg6: memref<16x2xf32, #tpu.memory_space<vmem>>, %arg7: memref<8x32xf32, #tpu.memory_space<vmem>>) attributes {dimension_semantics = [#tpu.dimension_semantics<parallel>], iteration_bounds = array<i64: 2>, scalar_prefetch = 0 : i64, scratch_operands = 0 : i64, tpu.core_type = #tpu.core_type<tc>, window_params = [{transform_indices = @transform_0, window_bounds = array<i64: 8, 48>}, {transform_indices = @transform_1, window_bounds = array<i64: 8, 8, 32>}, {transform_indices = @transform_2, window_bounds = array<i64: 8, 8, 16>}, {pipeline_mode = #tpu.pipeline_mode<synchronous>, transform_indices = @transform_3, window_bounds = array<i64: 48, 2>}, {pipeline_mode = #tpu.pipeline_mode<synchronous>, transform_indices = @transform_4, window_bounds = array<i64: 32, 2>}, {pipeline_mode = #tpu.pipeline_mode<synchronous>, transform_indices = @transform_5, window_bounds = array<i64: 16, 2>}, {transform_indices = @transform_6, window_bounds = array<i64: 8, 32>}]} {
    %c0 = arith.constant 0 : index
    %c0_0 = arith.constant 0 : index
    %c0_1 = arith.constant 0 : index
    %0 = vector.load %arg2[%c0, %c0_0, %c0_1] : memref<8x8x32xf32, #tpu.memory_space<vmem>>, vector<8x8x32xf32>
    %c0_2 = arith.constant 0 : index
    %c0_3 = arith.constant 0 : index
    %c0_4 = arith.constant 0 : index
    %1 = vector.load %arg3[%c0_2, %c0_3, %c0_4] : memref<8x8x16xf32, #tpu.memory_space<vmem>>, vector<8x8x16xf32>
    %2 = vector.shape_cast %0 : vector<8x8x32xf32> to vector<64x32xf32>
    %c0_5 = arith.constant 0 : index
    %c0_6 = arith.constant 0 : index
    %3 = vector.load %arg5[%c0_5, %c0_6] : memref<32x2xf32, #tpu.memory_space<vmem>>, vector<32x2xf32>
    %cst = arith.constant dense<0.000000e+00> : vector<64x2xf32>
    %4 = tpu.matmul %2, %3, %cst {dimension_numbers = #tpu.dot_dimension_numbers<[1], [0], [0], [1], [0, 0, 1, 1], [], []>} : vector<64x32xf32>, vector<32x2xf32>, vector<64x2xf32> -> vector<64x2xf32>
    %5 = vector.shape_cast %1 : vector<8x8x16xf32> to vector<64x16xf32>
    %c0_7 = arith.constant 0 : index
    %c0_8 = arith.constant 0 : index
    %6 = vector.load %arg6[%c0_7, %c0_8] : memref<16x2xf32, #tpu.memory_space<vmem>>, vector<16x2xf32>
    %cst_9 = arith.constant dense<0.000000e+00> : vector<64x2xf32>
    %7 = tpu.matmul %5, %6, %cst_9 {dimension_numbers = #tpu.dot_dimension_numbers<[1], [0], [0], [1], [0, 0, 1, 1], [], []>} : vector<64x16xf32>, vector<16x2xf32>, vector<64x2xf32> -> vector<64x2xf32>
    %8 = arith.addf %4, %7 : vector<64x2xf32>
    %9 = vector.shape_cast %8 : vector<64x2xf32> to vector<8x8x2xf32>
    %c0_10 = arith.constant 0 : index
    %c0_11 = arith.constant 0 : index
    %10 = vector.load %arg1[%c0_10, %c0_11] : memref<8x48xf32, #tpu.memory_space<vmem>>, vector<8x48xf32>
    %c0_12 = arith.constant 0 : index
    %c0_13 = arith.constant 0 : index
    %11 = vector.load %arg4[%c0_12, %c0_13] : memref<48x2xf32, #tpu.memory_space<vmem>>, vector<48x2xf32>
    %cst_14 = arith.constant dense<0.000000e+00> : vector<8x2xf32>
    %12 = tpu.matmul %10, %11, %cst_14 {dimension_numbers = #tpu.dot_dimension_numbers<[1], [0], [0], [1], [0, 0, 1, 1], [], []>} : vector<8x48xf32>, vector<48x2xf32>, vector<8x2xf32> -> vector<8x2xf32>
    %13 = vector.shape_cast %12 : vector<8x2xf32> to vector<8x1x2xf32>
    %14 = vector.broadcast %13 : vector<8x1x2xf32> to vector<8x8x2xf32>
    %15 = arith.addf %9, %14 : vector<8x8x2xf32>
    %cst_15 = arith.constant 0.000000e+00 : f32
    %16 = vector.broadcast %cst_15 : f32 to vector<8x8x2xf32>
    %17 = arith.cmpf ogt, %15, %16 : vector<8x8x2xf32>
    %cst_16 = arith.constant 2.000000e-01 : f32
    %18 = vector.broadcast %cst_16 : f32 to vector<8x8x2xf32>
    %19 = arith.mulf %18, %15 : vector<8x8x2xf32>
    %20 = arith.select %17, %15, %19 : vector<8x8x2xi1>, vector<8x8x2xf32>
    %cst_17 = arith.constant dense<0xFF800000> : vector<8x2xf32>
    %21 = vector.multi_reduction <maximumf>, %20, %cst_17 [1] : vector<8x8x2xf32> to vector<8x2xf32>
    %22 = vector.shape_cast %21 : vector<8x2xf32> to vector<8x1x2xf32>
    %23 = vector.broadcast %22 : vector<8x1x2xf32> to vector<8x8x2xf32>
    %24 = arith.subf %20, %23 : vector<8x8x2xf32>
    %25 = math.exp %24 : vector<8x8x2xf32>
    %cst_18 = arith.constant dense<0.000000e+00> : vector<8x2xf32>
    %26 = vector.multi_reduction <add>, %25, %cst_18 [1] : vector<8x8x2xf32> to vector<8x2xf32>
    %27 = vector.shape_cast %26 : vector<8x2xf32> to vector<8x1x2xf32>
    %28 = tpu.reciprocal %27 {approx = true} : vector<8x1x2xf32> -> vector<8x1x2xf32>
    %29 = vector.broadcast %28 : vector<8x1x2xf32> to vector<8x8x2xf32>
    %30 = arith.mulf %25, %29 : vector<8x8x2xf32>
    %cst_19 = arith.constant dense<0.000000e+00> : vector<8x8xf32>
    %31 = vector.multi_reduction <add>, %30, %cst_19 [2] : vector<8x8x2xf32> to vector<8x8xf32>
    %cst_20 = arith.constant 5.000000e-01 : f32
    %32 = vector.broadcast %cst_20 : f32 to vector<8x8xf32>
    %33 = arith.mulf %31, %32 : vector<8x8xf32>
    %34 = vector.shape_cast %33 : vector<8x8xf32> to vector<8x8x1xf32>
    %35 = vector.broadcast %34 : vector<8x8x1xf32> to vector<8x8x32xf32>
    %36 = arith.mulf %35, %0 : vector<8x8x32xf32>
    %cst_21 = arith.constant dense<0.000000e+00> : vector<8x32xf32>
    %37 = vector.multi_reduction <add>, %36, %cst_21 [1] : vector<8x8x32xf32> to vector<8x32xf32>
    %38 = arith.negf %37 : vector<8x32xf32>
    %39 = math.exp %38 : vector<8x32xf32>
    %cst_22 = arith.constant 1.000000e+00 : f32
    %40 = vector.broadcast %cst_22 : f32 to vector<8x32xf32>
    %41 = arith.addf %40, %39 : vector<8x32xf32>
    %42 = arith.divf %40, %41 : vector<8x32xf32>
    %c0_23 = arith.constant 0 : index
    %c0_24 = arith.constant 0 : index
    %43 = vector.load %arg7[%c0_23, %c0_24] : memref<8x32xf32, #tpu.memory_space<vmem>>, vector<8x32xf32>
    tpu.vector_store %arg7[%c0_23, %c0_24], %42 {strides = array<i32>} : memref<8x32xf32, #tpu.memory_space<vmem>>, vector<8x32xf32>,
    return
  }
  func.func @transform_0(%arg0: i32) -> (i32, i32) {
    %c0_i32 = arith.constant 0 : i32
    %c0_i32_0 = arith.constant 0 : i32
    return %arg0, %c0_i32 : i32, i32
  }
  func.func @transform_1(%arg0: i32) -> (i32, i32, i32) {
    %c0_i32 = arith.constant 0 : i32
    %c0_i32_0 = arith.constant 0 : i32
    %c0_i32_1 = arith.constant 0 : i32
    return %arg0, %c0_i32, %c0_i32_0 : i32, i32, i32
  }
  func.func @transform_2(%arg0: i32) -> (i32, i32, i32) {
    %c0_i32 = arith.constant 0 : i32
    %c0_i32_0 = arith.constant 0 : i32
    %c0_i32_1 = arith.constant 0 : i32
    return %arg0, %c0_i32, %c0_i32_0 : i32, i32, i32
  }
  func.func @transform_3(%arg0: i32) -> (i32, i32) {
    %c0_i32 = arith.constant 0 : i32
    %c0_i32_0 = arith.constant 0 : i32
    %c0_i32_1 = arith.constant 0 : i32
    return %c0_i32, %c0_i32_0 : i32, i32
  }
  func.func @transform_4(%arg0: i32) -> (i32, i32) {
    %c0_i32 = arith.constant 0 : i32
    %c0_i32_0 = arith.constant 0 : i32
    %c0_i32_1 = arith.constant 0 : i32
    return %c0_i32, %c0_i32_0 : i32, i32
  }
  func.func @transform_5(%arg0: i32) -> (i32, i32) {
    %c0_i32 = arith.constant 0 : i32
    %c0_i32_0 = arith.constant 0 : i32
    %c0_i32_1 = arith.constant 0 : i32
    return %c0_i32, %c0_i32_0 : i32, i32
  }
  func.func @transform_6(%arg0: i32) -> (i32, i32) {
    %c0_i32 = arith.constant 0 : i32
    %c0_i32_0 = arith.constant 0 : i32
    return %arg0, %c0_i32 : i32, i32
  }
}

</mosaic_0001>

<llo_original>
// kernel: tpu_custom_call.1
$region0: #{tpu_custom_call.1}
  #allocation0 [shape = 'u32[]', space=smem, size = 0x4, offset = 0x4, fixed_abs, tag = 'smem constant byte address 0x4 - core index']
  #allocation1 [shape = 'u32[144,128]{1,0:T(1,128)}', space=vmem, size = 0x12000, scoped, tag = 'internal scratch']
  %s0 = inlined_call_operand.vmem [shape: f32[16,48], index: 0, kind: input, shape index: {}]
  %s1 = inlined_call_operand.hbm [shape: f32[16,8,32], index: 1, kind: input, shape index: {}]
  %s2 = inlined_call_operand.hbm [shape: f32[16,8,16], index: 2, kind: input, shape index: {}]
  %s3 = inlined_call_operand.vmem [shape: f32[48,2], index: 3, kind: input, shape index: {}]
  %s4 = inlined_call_operand.vmem [shape: f32[32,2], index: 4, kind: input, shape index: {}]
  %s5 = inlined_call_operand.vmem [shape: f32[16,2], index: 5, kind: input, shape index: {}]
  %s6 = inlined_call_operand.hbm [shape: f32[16,32], index: 6, kind: output, shape index: {}]
  %s7 = sld [smem:[#allocation0]]
  $region65: #{tpu_custom_call.1} parent=0
    _
  %s9 = ssub.s32 1, %s7
  %s10 = scalar_select 0, %s9, %s7
  $region1: #{tpu_custom_call.1} parent=0
    #allocation2 [shape = 'u8[65536]{0}', space=vmem, size = 0x10000, scoped, tag = 'input window, operand 1']
    #allocation3 [shape = 's32[2]{0}', space=sflag, size = 0x8, scoped, tag = 'scoped memory for tpu_custom_call.1']
    #allocation4 [shape = 's32[2]{0}', space=sflag, size = 0x8, scoped, tag = 'scoped memory for tpu_custom_call.1']
    #allocation5 [shape = 'u8[65536]{0}', space=vmem, size = 0x10000, scoped, tag = 'input window, operand 2']
    #allocation6 [shape = 's32[2]{0}', space=sflag, size = 0x8, scoped, tag = 'scoped memory for tpu_custom_call.1']
    #allocation7 [shape = 'u8[8192]{0}', space=vmem, size = 0x2000, scoped, tag = 'output window, operand 0']
    %11 = vsyncpa [#allocation3], 0
    %s12 = scalar_lea.sflag [#allocation3], 1
    %13 = vsyncpa %s12, 0
    %14 = vsyncpa [#allocation6], 0
    %s15 = scalar_lea.sflag [#allocation6], 1
    %16 = vsyncpa %s15, 0
    %17 = vsyncpa [#allocation4], 0
    %s18 = scalar_lea.sflag [#allocation4], 1
    %19 = vsyncpa %s18, 0
    loop: start=0, step=1, limit=4
    $region2: #{tpu_custom_call.1} parent=1 // loop_pre_header
      _
    $region3: #{tpu_custom_call.1} parent=1 // loop_header
      %s21 = sphi 0, %s25
      %p22 = scmp.ge.s32.totalorder %s21, 4
      %s31 = sphi 0, %s33
      %s34 = sphi 0, %s31
      %s35 = sphi 0, %s34
      %s51 = sphi 0, %s35
      %s57 = sphi 0, %s59
      %s60 = sphi 0, %s57
      %s61 = sphi 0, %s60
      %s77 = sphi 0, %s61
      %s83 = sphi 0, %s85
      %s86 = sphi 0, %s83
      %s87 = sphi 0, %s86
      %s103 = sphi 0, %s87
      %s107 = sphi 0, %s107
      %s109 = sphi 0, %s107
      %s110 = sphi 0, %s109
      %s124 = sphi 0, %s110
      %s128 = sphi 0, %s128
      %s130 = sphi 0, %s128
      %s131 = sphi 0, %s130
      %s145 = sphi 0, %s131
      %s149 = sphi 0, %s149
      %s151 = sphi 0, %s149
      %s152 = sphi 0, %s151
      %s166 = sphi 0, %s152
      %s172 = sphi 0, %s174
      %s175 = sphi 0, %s172
      %s176 = sphi 0, %s175
      %s192 = sphi 0, %s176
    $region4: #{tpu_custom_call.1} parent=1 // loop_header_branch
      %24 = sbr.rel (%p22) target = $region8
    $region5: #{tpu_custom_call.1} parent=1 // loop_body
      %s26 = ssub.s32 %s21, 1
      %s27 = ssub.s32 %s21, 2
      %s28 = sadd.s32 %s21, 1
      %s29 = ssub.s32 %s21, %s28
      %p30 = scmp.eq.s32.totalorder %s29, 0
      %s32 = sadd.s32 %s31, 1
      %s33 = scalar_select %p30, %s31, %s32
      %p36 = pneg %p30
      %p37 = scmp.eq.s32.totalorder %s21, 1
      %p38 = por %p36, %p37
      %p39 = scmp.ne.s32.totalorder %s31, %s34
      %p40 = scmp.eq.s32.totalorder %s21, 0
      %p41 = por %p39, %p40
      %p42 = scmp.ne.s32.totalorder %s31, %s34
      %p43 = scmp.eq.s32.totalorder %s26, 1
      %p44 = por %p42, %p43
      %p45 = scmp.ne.s32.totalorder %s34, %s35
      %p46 = scmp.eq.s32.totalorder %s26, 0
      %p47 = por %p45, %p46
      %p48 = scmp.ne.s32.totalorder %s34, %s35
      %p49 = scmp.eq.s32.totalorder %s27, 1
      %p50 = por %p48, %p49
      %p52 = scmp.ne.s32.totalorder %s35, %s51
      %p53 = scmp.eq.s32.totalorder %s27, 0
      %p54 = por %p52, %p53
      %s55 = ssub.s32 %s21, %s28
      %p56 = scmp.eq.s32.totalorder %s55, 0
      %s58 = sadd.s32 %s57, 1
      %s59 = scalar_select %p56, %s57, %s58
      %p62 = pneg %p56
      %p63 = scmp.eq.s32.totalorder %s21, 1
      %p64 = por %p62, %p63
      %p65 = scmp.ne.s32.totalorder %s57, %s60
      %p66 = scmp.eq.s32.totalorder %s21, 0
      %p67 = por %p65, %p66
      %p68 = scmp.ne.s32.totalorder %s57, %s60
      %p69 = scmp.eq.s32.totalorder %s26, 1
      %p70 = por %p68, %p69
      %p71 = scmp.ne.s32.totalorder %s60, %s61
      %p72 = scmp.eq.s32.totalorder %s26, 0
      %p73 = por %p71, %p72
      %p74 = scmp.ne.s32.totalorder %s60, %s61
      %p75 = scmp.eq.s32.totalorder %s27, 1
      %p76 = por %p74, %p75
      %p78 = scmp.ne.s32.totalorder %s61, %s77
      %p79 = scmp.eq.s32.totalorder %s27, 0
      %p80 = por %p78, %p79
      %s81 = ssub.s32 %s21, %s28
      %p82 = scmp.eq.s32.totalorder %s81, 0
      %s84 = sadd.s32 %s83, 1
      %s85 = scalar_select %p82, %s83, %s84
      %p88 = pneg %p82
      %p89 = scmp.eq.s32.totalorder %s21, 1
      %p90 = por %p88, %p89
      %p91 = scmp.ne.s32.totalorder %s83, %s86
      %p92 = scmp.eq.s32.totalorder %s21, 0
      %p93 = por %p91, %p92
      %p94 = scmp.ne.s32.totalorder %s83, %s86
      %p95 = scmp.eq.s32.totalorder %s26, 1
      %p96 = por %p94, %p95
      %p97 = scmp.ne.s32.totalorder %s86, %s87
      %p98 = scmp.eq.s32.totalorder %s26, 0
      %p99 = por %p97, %p98
      %p100 = scmp.ne.s32.totalorder %s86, %s87
      %p101 = scmp.eq.s32.totalorder %s27, 1
      %p102 = por %p100, %p101
      %p104 = scmp.ne.s32.totalorder %s87, %s103
      %p105 = scmp.eq.s32.totalorder %s27, 0
      %p106 = por %p104, %p105
      %s108 = sadd.s32 %s107, 1
      %p111 = scmp.eq.s32.totalorder %s21, 1
      %p112 = scmp.ne.s32.totalorder %s107, %s109
      %p113 = scmp.eq.s32.totalorder %s21, 0
      %p114 = por %p112, %p113
      %p115 = scmp.ne.s32.totalorder %s107, %s109
      %p116 = scmp.eq.s32.totalorder %s26, 1
      %p117 = por %p115, %p116
      %p118 = scmp.ne.s32.totalorder %s109, %s110
      %p119 = scmp.eq.s32.totalorder %s26, 0
      %p120 = por %p118, %p119
      %p121 = scmp.ne.s32.totalorder %s109, %s110
      %p122 = scmp.eq.s32.totalorder %s27, 1
      %p123 = por %p121, %p122
      %p125 = scmp.ne.s32.totalorder %s110, %s124
      %p126 = scmp.eq.s32.totalorder %s27, 0
      %p127 = por %p125, %p126
      %s129 = sadd.s32 %s128, 1
      %p132 = scmp.eq.s32.totalorder %s21, 1
      %p133 = scmp.ne.s32.totalorder %s128, %s130
      %p134 = scmp.eq.s32.totalorder %s21, 0
      %p135 = por %p133, %p134
      %p136 = scmp.ne.s32.totalorder %s128, %s130
      %p137 = scmp.eq.s32.totalorder %s26, 1
      %p138 = por %p136, %p137
      %p139 = scmp.ne.s32.totalorder %s130, %s131
      %p140 = scmp.eq.s32.totalorder %s26, 0
      %p141 = por %p139, %p140
      %p142 = scmp.ne.s32.totalorder %s130, %s131
      %p143 = scmp.eq.s32.totalorder %s27, 1
      %p144 = por %p142, %p143
      %p146 = scmp.ne.s32.totalorder %s131, %s145
      %p147 = scmp.eq.s32.totalorder %s27, 0
      %p148 = por %p146, %p147
      %s150 = sadd.s32 %s149, 1
      %p153 = scmp.eq.s32.totalorder %s21, 1
      %p154 = scmp.ne.s32.totalorder %s149, %s151
      %p155 = scmp.eq.s32.totalorder %s21, 0
      %p156 = por %p154, %p155
      %p157 = scmp.ne.s32.totalorder %s149, %s151
      %p158 = scmp.eq.s32.totalorder %s26, 1
      %p159 = por %p157, %p158
      %p160 = scmp.ne.s32.totalorder %s151, %s152
      %p161 = scmp.eq.s32.totalorder %s26, 0
      %p162 = por %p160, %p161
      %p163 = scmp.ne.s32.totalorder %s151, %s152
      %p164 = scmp.eq.s32.totalorder %s27, 1
      %p165 = por %p163, %p164
      %p167 = scmp.ne.s32.totalorder %s152, %s166
      %p168 = scmp.eq.s32.totalorder %s27, 0
      %p169 = por %p167, %p168
      %s170 = ssub.s32 %s21, %s28
      %p171 = scmp.eq.s32.totalorder %s170, 0
      %s173 = sadd.s32 %s172, 1
      %s174 = scalar_select %p171, %s172, %s173
      %p177 = pneg %p171
      %p178 = scmp.eq.s32.totalorder %s21, 1
      %p179 = por %p177, %p178
      %p180 = scmp.ne.s32.totalorder %s172, %s175
      %p181 = scmp.eq.s32.totalorder %s21, 0
      %p182 = por %p180, %p181
      %p183 = scmp.ne.s32.totalorder %s172, %s175
      %p184 = scmp.eq.s32.totalorder %s26, 1
      %p185 = por %p183, %p184
      %p186 = scmp.ne.s32.totalorder %s175, %s176
      %p187 = scmp.eq.s32.totalorder %s26, 0
      %p188 = por %p186, %p187
      %p189 = scmp.ne.s32.totalorder %s175, %s176
      %p190 = scmp.eq.s32.totalorder %s27, 1
      %p191 = por %p189, %p190
      %p193 = scmp.ne.s32.totalorder %s176, %s192
      %p194 = scmp.eq.s32.totalorder %s27, 0
      %p195 = por %p193, %p194
      %p196 = scmp.le.s32.totalorder 1, %s21
      %p197 = scmp.lt.s32.totalorder %s21, 3
      %p198 = pnand %p196, %p197
      %p199 = pneg %p198
      // Predicated region
      $region9: #{tpu_custom_call.1} parent=5 // pred_check
        _
      $region10: #{tpu_custom_call.1} parent=5 // pred_check_branch
        %201 = sbr.rel (%p198) target = $region12
      $region11: #{tpu_custom_call.1} parent=5 // pred_region
        %s202 = ssub.s32 %s21, 1
        // Predicated region
        $region13: #{tpu_custom_call.1} parent=11 // pred_check
          %p203 = pneg %p120
        $region14: #{tpu_custom_call.1} parent=11 // pred_check_branch
          %205 = sbr.rel (%p203) target = $region16
        $region15: #{tpu_custom_call.1} parent=11 // pred_region
          _
        $region16: #{tpu_custom_call.1} parent=11 // pred_fallthru
          _
        // Predicated region
        $region17: #{tpu_custom_call.1} parent=11 // pred_check
          %p206 = pneg %p141
        $region18: #{tpu_custom_call.1} parent=11 // pred_check_branch
          %208 = sbr.rel (%p206) target = $region20
        $region19: #{tpu_custom_call.1} parent=11 // pred_region
          _
        $region20: #{tpu_custom_call.1} parent=11 // pred_fallthru
          _
        // Predicated region
        $region21: #{tpu_custom_call.1} parent=11 // pred_check
          %p209 = pneg %p162
        $region22: #{tpu_custom_call.1} parent=11 // pred_check_branch
          %211 = sbr.rel (%p209) target = $region24
        $region23: #{tpu_custom_call.1} parent=11 // pred_region
          _
        $region24: #{tpu_custom_call.1} parent=11 // pred_fallthru
          _
      $region12: #{tpu_custom_call.1} parent=5 // pred_fallthru
        _
      %p212 = scmp.lt.s32.totalorder %s21, 2
      // Predicated region
      $region25: #{tpu_custom_call.1} parent=5 // pred_check
        %p213 = pneg %p212
      $region26: #{tpu_custom_call.1} parent=5 // pred_check_branch
        %215 = sbr.rel (%p213) target = $region28
      $region27: #{tpu_custom_call.1} parent=5 // pred_region
        // Predicated region
        $region29: #{tpu_custom_call.1} parent=27 // pred_check
          %p216 = pneg %p41
        $region30: #{tpu_custom_call.1} parent=27 // pred_check_branch
          %218 = sbr.rel (%p216) target = $region32
        $region31: #{tpu_custom_call.1} parent=27 // pred_region
          %p219 = scmp.lt.s32.totalorder %s21, 1
          %s220 = scalar_select %p219, %s21, 1
          %s221 = smul.addr %s220, 8
          %s222 = scalar_lea.vmem %s0, %s221
        $region32: #{tpu_custom_call.1} parent=27 // pred_fallthru
          _
        // Predicated region
        $region33: #{tpu_custom_call.1} parent=27 // pred_check
          %p223 = pneg %p67
        $region34: #{tpu_custom_call.1} parent=27 // pred_check_branch
          %225 = sbr.rel (%p223) target = $region36
        $region35: #{tpu_custom_call.1} parent=27 // pred_region
          %s226 = sand.u32 %s57, 1
          %s227 = scalar_lea.sflag [#allocation3], %s226
          %s228 = sand.u32 %s57, 1
          %s229 = smul.addr %s228, 64
          %s230 = scalar_lea.vmem [#allocation2], %s229
          %s231 = smul.u32 8, %s21
          %s233 = ssub.s32 1024, 1024
          %234 = vsyncadd %s227, %s233
          %s235 = smul.addr %s231, 128
          %s236 = scalar_lea.hbm %s1, %s235
          %s237 = sshll.u32 %s230, 4
          %s238 = int_to_ptr.vmem [resolvable:$true] %s237
          %243 = dma.hbm_to_vmem [thread:$0]  %s236, 1024, %s238, %s227, 128, 128, 8
        $region36: #{tpu_custom_call.1} parent=27 // pred_fallthru
          _
        // Predicated region
        $region37: #{tpu_custom_call.1} parent=27 // pred_check
          %p244 = pneg %p93
        $region38: #{tpu_custom_call.1} parent=27 // pred_check_branch
          %246 = sbr.rel (%p244) target = $region40
        $region39: #{tpu_custom_call.1} parent=27 // pred_region
          %s247 = sand.u32 %s83, 1
          %s248 = scalar_lea.sflag [#allocation6], %s247
          %s249 = sand.u32 %s83, 1
          %s250 = smul.addr %s249, 64
          %s251 = scalar_lea.vmem [#allocation5], %s250
          %s252 = smul.u32 8, %s21
          %s254 = ssub.s32 1024, 1024
          %255 = vsyncadd %s248, %s254
          %s256 = smul.addr %s252, 128
          %s257 = scalar_lea.hbm %s2, %s256
          %s258 = sshll.u32 %s251, 4
          %s259 = int_to_ptr.vmem [resolvable:$true] %s258
          %264 = dma.hbm_to_vmem [thread:$0]  %s257, 1024, %s259, %s248, 128, 128, 8
        $region40: #{tpu_custom_call.1} parent=27 // pred_fallthru
          _
      $region28: #{tpu_custom_call.1} parent=5 // pred_fallthru
        _
      %p265 = scmp.le.s32.totalorder 1, %s21
      %p266 = scmp.lt.s32.totalorder %s21, 3
      %p267 = pnand %p265, %p266
      %p268 = pneg %p267
      // Predicated region
      $region41: #{tpu_custom_call.1} parent=5 // pred_check
        _
      $region42: #{tpu_custom_call.1} parent=5 // pred_check_branch
        %270 = sbr.rel (%p267) target = $region44
      $region43: #{tpu_custom_call.1} parent=5 // pred_region
        %s271 = ssub.s32 %s21, 1
        %s272 = sand.u32 %s60, 1
        %s273 = scalar_lea.sflag [#allocation3], %s272
        %s274 = sand.u32 %s60, 1
        %s275 = smul.addr %s274, 64
        %s276 = scalar_lea.vmem [#allocation2], %s275
        // Predicated region
        $region45: #{tpu_custom_call.1} parent=43 // pred_check
          %p277 = pneg %p73
        $region46: #{tpu_custom_call.1} parent=43 // pred_check_branch
          %279 = sbr.rel (%p277) target = $region48
        $region47: #{tpu_custom_call.1} parent=43 // pred_region
          %280 = dma.done %s273, 1024
        $region48: #{tpu_custom_call.1} parent=43 // pred_fallthru
          _
        %s281 = sand.u32 %s86, 1
        %s282 = scalar_lea.sflag [#allocation6], %s281
        %s283 = sand.u32 %s86, 1
        %s284 = smul.addr %s283, 64
        %s285 = scalar_lea.vmem [#allocation5], %s284
        // Predicated region
        $region49: #{tpu_custom_call.1} parent=43 // pred_check
          %p286 = pneg %p99
        $region50: #{tpu_custom_call.1} parent=43 // pred_check_branch
          %288 = sbr.rel (%p286) target = $region52
        $region51: #{tpu_custom_call.1} parent=43 // pred_region
          %289 = dma.done %s282, 1024
        $region52: #{tpu_custom_call.1} parent=43 // pred_fallthru
          _
        %p290 = scmp.lt.s32.totalorder %s26, 1
        %s291 = scalar_select %p290, %s26, 1
        %s292 = smul.addr %s291, 8
        %s293 = scalar_lea.vmem %s0, %s292
        %p294 = pneg %p47
        %p295 = pneg %p44
        %s296 = sand.u32 %s60, 1
        %s297 = scalar_lea.sflag [#allocation3], %s296
        %s298 = sand.u32 %s60, 1
        %s299 = smul.addr %s298, 64
        %s300 = scalar_lea.vmem [#allocation2], %s299
        %p301 = pneg %p73
        %p302 = pneg %p70
        %s303 = sand.u32 %s86, 1
        %s304 = scalar_lea.sflag [#allocation6], %s303
        %s305 = sand.u32 %s86, 1
        %s306 = smul.addr %s305, 64
        %s307 = scalar_lea.vmem [#allocation5], %s306
        %p308 = pneg %p99
        %p309 = pneg %p96
        %p310 = pneg %p120
        %p311 = pneg %p117
        %p312 = pneg %p141
        %p313 = pneg %p138
        %p314 = pneg %p162
        %p315 = pneg %p159
        %p316 = pneg %p188
        %p317 = pneg %p185
        %s318 = sand.u32 %s175, 1
        %s319 = scalar_lea.sflag [#allocation4], %s318
        %s320 = sand.u32 %s175, 1
        %s321 = smul.addr %s320, 8
        %s322 = scalar_lea.vmem [#allocation7], %s321
        %p323 = scmp.lt.s32.totalorder %s26, 1
        %s324 = scalar_select %p323, %s26, 1
        %s325 = smul.addr %s324, 8
        %s326 = scalar_lea.vmem %s0, %s325
        %s327 = smul.u32 8, %s26
        %s328 = smul.u32 8, %s26
        %v329 = vld [vmem:[%s276] sm:$0xff]
        %v330 = vld [vmem:[%s276 + $0x8] sm:$0xff]
        %v331 = vld [vmem:[%s276 + $0x10] sm:$0xff]
        %v332 = vld [vmem:[%s276 + $0x18] sm:$0xff]
        %v333 = vld [vmem:[%s276 + $0x20] sm:$0xff]
        %v334 = vld [vmem:[%s276 + $0x28] sm:$0xff]
        %v335 = vld [vmem:[%s276 + $0x30] sm:$0xff]
        %v336 = vld [vmem:[%s276 + $0x38] sm:$0xff]
        %v337 = vld [vmem:[%s285] sm:$0xff]
        %v338 = vld [vmem:[%s285 + $0x8] sm:$0xff]
        %v339 = vld [vmem:[%s285 + $0x10] sm:$0xff]
        %v340 = vld [vmem:[%s285 + $0x18] sm:$0xff]
        %v341 = vld [vmem:[%s285 + $0x20] sm:$0xff]
        %v342 = vld [vmem:[%s285 + $0x28] sm:$0xff]
        %v343 = vld [vmem:[%s285 + $0x30] sm:$0xff]
        %v344 = vld [vmem:[%s285 + $0x38] sm:$0xff]
        %v345 = vld [vmem:[%s4] sm:$0xff]
        %v346 = vld [vmem:[%s4 + $0x8] sm:$0xff]
        %v347 = vld [vmem:[%s4 + $0x10] sm:$0xff]
        %v348 = vld [vmem:[%s4 + $0x18] sm:$0xff]
        %v349 = vld [vmem:[%s5] sm:$0xff]
        %v350 = vld [vmem:[%s5 + $0x8] sm:$0xff]
        %vm351 = vcmask 130048
        %v353 = vsel %vm351, %v337, 0
        %v356 = vsel %vm351, %v338, 0
        %v359 = vsel %vm351, %v339, 0
        %v362 = vsel %vm351, %v340, 0
        %v365 = vsel %vm351, %v341, 0
        %v368 = vsel %vm351, %v342, 0
        %v371 = vsel %vm351, %v343, 0
        %v374 = vsel %vm351, %v344, 0
        %376 = vmatprep.subr.mxu0 0.0
        %377 = vmatpush1.msra.mxu0 %v349
        %378 = vmatprep.subr.mxu0 0.0
        %379 = vmatpush1.msra.mxu0 %v350
        %380 = vmatprep.subr.mxu0 0.0
        %381 = vmatpush1.msra.mxu0 0.0
        %382 = vmatprep.subr.mxu0 0.0
        %383 = vmatpush1.msra.mxu0 0.0
        %384 = vmatprep.subr.mxu0 0.0
        %385 = vmatpush1.msra.mxu0 0.0
        %386 = vmatprep.subr.mxu0 0.0
        %387 = vmatpush1.msra.mxu0 0.0
        %388 = vmatprep.subr.mxu0 0.0
        %389 = vmatpush1.msra.mxu0 0.0
        %390 = vmatprep.subr.mxu0 0.0
        %391 = vmatpush1.msra.mxu0 0.0
        %392 = vmatprep.subr.mxu0 0.0
        %393 = vmatpush1.msra.mxu0 0.0
        %394 = vmatprep.subr.mxu0 0.0
        %395 = vmatpush1.msra.mxu0 0.0
        %396 = vmatprep.subr.mxu0 0.0
        %397 = vmatpush1.msra.mxu0 0.0
        %398 = vmatprep.subr.mxu0 0.0
        %399 = vmatpush1.msra.mxu0 0.0
        %400 = vmatprep.subr.mxu0 0.0
        %401 = vmatpush1.msra.mxu0 0.0
        %402 = vmatprep.subr.mxu0 0.0
        %403 = vmatpush1.msra.mxu0 0.0
        %404 = vmatprep.subr.mxu0 0.0
        %405 = vmatpush1.msra.mxu0 0.0
        %406 = vmatprep.subr.mxu0 0.0
        %407 = vmatpush1.msra.mxu0 0.0
        %408 = vmatprep.subr.mxu0 0.0
        %409 = vmatpush1.msra.mxu0 0.0
        %410 = vmatprep.subr.mxu0 0.0
        %411 = vmatpush1.msra.mxu0 0.0
        %412 = vmatprep.subr.mxu0 0.0
        %413 = vmatpush1.msra.mxu0 0.0
        %414 = vmatprep.subr.mxu0 0.0
        %415 = vmatpush1.msra.mxu0 0.0
        %416 = vmatprep.subr.mxu0 0.0
        %417 = vmatpush1.msra.mxu0 0.0
        %418 = vmatprep.subr.mxu0 0.0
        %419 = vmatpush1.msra.mxu0 0.0
        %420 = vmatprep.subr.mxu0 0.0
        %421 = vmatpush1.msra.mxu0 0.0
        %422 = vmatprep.subr.mxu0 0.0
        %423 = vmatpush1.msra.mxu0 0.0
        %424 = vmatprep.subr.mxu0 0.0
        %425 = vmatpush1.msra.mxu0 0.0
        %426 = vmatprep.subr.mxu0 0.0
        %427 = vmatpush1.msra.mxu0 0.0
        %428 = vmatprep.subr.mxu0 0.0
        %429 = vmatpush1.msra.mxu0 0.0
        %430 = vmatprep.subr.mxu0 0.0
        %431 = vmatpush1.msra.mxu0 0.0
        %432 = vmatprep.subr.mxu0 0.0
        %433 = vmatpush1.msra.mxu0 0.0
        %434 = vmatprep.subr.mxu0 0.0
        %435 = vmatpush1.msra.mxu0 0.0
        %436 = vmatprep.subr.mxu0 0.0
        %437 = vmatpush1.msra.mxu0 0.0
        %438 = vmatprep.subr.mxu0 0.0
        %439 = vmatpush1.msra.mxu0 0.0
        %440 = vmatprep.mubr.f32.mxu0 0.0
        %441 = vmatmul.mubr.f32.gmra.mrb[0].mxu0 %v353
        %v442 = vpop.f32.mrb[0].mxu0
        %v443 = vadd.f32 0.0, %v442
        %v444 = vpop.f32.mrb[0].mxu0
        %445 = vmatprep.mubr.f32.mxu0 0.0
        %446 = vmatmul.mubr.f32.gmra.mrb[0].mxu0 %v356
        %v447 = vpop.f32.mrb[0].mxu0
        %v448 = vadd.f32 0.0, %v447
        %v449 = vpop.f32.mrb[0].mxu0
        %450 = vmatprep.mubr.f32.mxu0 0.0
        %451 = vmatmul.mubr.f32.gmra.mrb[0].mxu0 %v359
        %v452 = vpop.f32.mrb[0].mxu0
        %v453 = vadd.f32 0.0, %v452
        %v454 = vpop.f32.mrb[0].mxu0
        %455 = vmatprep.mubr.f32.mxu0 0.0
        %456 = vmatmul.mubr.f32.gmra.mrb[0].mxu0 %v362
        %v457 = vpop.f32.mrb[0].mxu0
        %v458 = vadd.f32 0.0, %v457
        %v459 = vpop.f32.mrb[0].mxu0
        %460 = vmatprep.mubr.f32.mxu0 0.0
        %461 = vmatmul.mubr.f32.gmra.mrb[0].mxu0 %v365
        %v462 = vpop.f32.mrb[0].mxu0
        %v463 = vadd.f32 0.0, %v462
        %v464 = vpop.f32.mrb[0].mxu0
        %465 = vmatprep.mubr.f32.mxu0 0.0
        %466 = vmatmul.mubr.f32.gmra.mrb[0].mxu0 %v368
        %v467 = vpop.f32.mrb[0].mxu0
        %v468 = vadd.f32 0.0, %v467
        %v469 = vpop.f32.mrb[0].mxu0
        %470 = vmatprep.mubr.f32.mxu0 0.0
        %471 = vmatmul.mubr.f32.gmra.mrb[0].mxu0 %v371
        %v472 = vpop.f32.mrb[0].mxu0
        %v473 = vadd.f32 0.0, %v472
        %v474 = vpop.f32.mrb[0].mxu0
        %475 = vmatprep.mubr.f32.mxu0 0.0
        %476 = vmatmul.mubr.f32.gmra.mrb[0].mxu0 %v374
        %v477 = vpop.f32.mrb[0].mxu0
        %v478 = vadd.f32 0.0, %v477
        %v479 = vpop.f32.mrb[0].mxu0
        %480 = vdwg.mxu0
        %vm481 = vcmask 261120
        %v483 = vsel %vm481, %v329, 0
        %v486 = vsel %vm481, %v330, 0
        %v489 = vsel %vm481, %v331, 0
        %v492 = vsel %vm481, %v332, 0
        %v495 = vsel %vm481, %v333, 0
        %v498 = vsel %vm481, %v334, 0
        %v501 = vsel %vm481, %v335, 0
        %v504 = vsel %vm481, %v336, 0
        %506 = vmatprep.subr.mxu0 0.0
        %507 = vmatpush1.msra.mxu0 %v345
        %508 = vmatprep.subr.mxu0 0.0
        %509 = vmatpush1.msra.mxu0 %v346
        %510 = vmatprep.subr.mxu0 0.0
        %511 = vmatpush1.msra.mxu0 %v347
        %512 = vmatprep.subr.mxu0 0.0
        %513 = vmatpush1.msra.mxu0 %v348
        %514 = vmatprep.subr.mxu0 0.0
        %515 = vmatpush1.msra.mxu0 0.0
        %516 = vmatprep.subr.mxu0 0.0
        %517 = vmatpush1.msra.mxu0 0.0
        %518 = vmatprep.subr.mxu0 0.0
        %519 = vmatpush1.msra.mxu0 0.0
        %520 = vmatprep.subr.mxu0 0.0
        %521 = vmatpush1.msra.mxu0 0.0
        %522 = vmatprep.subr.mxu0 0.0
        %523 = vmatpush1.msra.mxu0 0.0
        %524 = vmatprep.subr.mxu0 0.0
        %525 = vmatpush1.msra.mxu0 0.0
        %526 = vmatprep.subr.mxu0 0.0
        %527 = vmatpush1.msra.mxu0 0.0
        %528 = vmatprep.subr.mxu0 0.0
        %529 = vmatpush1.msra.mxu0 0.0
        %530 = vmatprep.subr.mxu0 0.0
        %531 = vmatpush1.msra.mxu0 0.0
        %532 = vmatprep.subr.mxu0 0.0
        %533 = vmatpush1.msra.mxu0 0.0
        %534 = vmatprep.subr.mxu0 0.0
        %535 = vmatpush1.msra.mxu0 0.0
        %536 = vmatprep.subr.mxu0 0.0
        %537 = vmatpush1.msra.mxu0 0.0
        %538 = vmatprep.subr.mxu0 0.0
        %539 = vmatpush1.msra.mxu0 0.0
        %540 = vmatprep.subr.mxu0 0.0
        %541 = vmatpush1.msra.mxu0 0.0
        %542 = vmatprep.subr.mxu0 0.0
        %543 = vmatpush1.msra.mxu0 0.0
        %544 = vmatprep.subr.mxu0 0.0
        %545 = vmatpush1.msra.mxu0 0.0
        %546 = vmatprep.subr.mxu0 0.0
        %547 = vmatpush1.msra.mxu0 0.0
        %548 = vmatprep.subr.mxu0 0.0
        %549 = vmatpush1.msra.mxu0 0.0
        %550 = vmatprep.subr.mxu0 0.0
        %551 = vmatpush1.msra.mxu0 0.0
        %552 = vmatprep.subr.mxu0 0.0
        %553 = vmatpush1.msra.mxu0 0.0
        %554 = vmatprep.subr.mxu0 0.0
        %555 = vmatpush1.msra.mxu0 0.0
        %556 = vmatprep.subr.mxu0 0.0
        %557 = vmatpush1.msra.mxu0 0.0
        %558 = vmatprep.subr.mxu0 0.0
        %559 = vmatpush1.msra.mxu0 0.0
        %560 = vmatprep.subr.mxu0 0.0
        %561 = vmatpush1.msra.mxu0 0.0
        %562 = vmatprep.subr.mxu0 0.0
        %563 = vmatpush1.msra.mxu0 0.0
        %564 = vmatprep.subr.mxu0 0.0
        %565 = vmatpush1.msra.mxu0 0.0
        %566 = vmatprep.subr.mxu0 0.0
        %567 = vmatpush1.msra.mxu0 0.0
        %568 = vmatprep.subr.mxu0 0.0
        %569 = vmatpush1.msra.mxu0 0.0
        %570 = vmatprep.mubr.f32.mxu0 0.0
        %571 = vmatmul.mubr.f32.gmra.mrb[0].mxu0 %v483
        %v572 = vpop.f32.mrb[0].mxu0
        %v573 = vadd.f32 %v443, %v572
        %v574 = vpop.f32.mrb[0].mxu0
        %575 = vmatprep.mubr.f32.mxu0 0.0
        %576 = vmatmul.mubr.f32.gmra.mrb[0].mxu0 %v486
        %v577 = vpop.f32.mrb[0].mxu0
        %v578 = vadd.f32 %v448, %v577
        %v579 = vpop.f32.mrb[0].mxu0
        %580 = vmatprep.mubr.f32.mxu0 0.0
        %581 = vmatmul.mubr.f32.gmra.mrb[0].mxu0 %v489
        %v582 = vpop.f32.mrb[0].mxu0
        %v583 = vadd.f32 %v453, %v582
        %v584 = vpop.f32.mrb[0].mxu0
        %585 = vmatprep.mubr.f32.mxu0 0.0
        %586 = vmatmul.mubr.f32.gmra.mrb[0].mxu0 %v492
        %v587 = vpop.f32.mrb[0].mxu0
        %v588 = vadd.f32 %v458, %v587
        %v589 = vpop.f32.mrb[0].mxu0
        %590 = vmatprep.mubr.f32.mxu0 0.0
        %591 = vmatmul.mubr.f32.gmra.mrb[0].mxu0 %v495
        %v592 = vpop.f32.mrb[0].mxu0
        %v593 = vadd.f32 %v463, %v592
        %v594 = vpop.f32.mrb[0].mxu0
        %595 = vmatprep.mubr.f32.mxu0 0.0
        %596 = vmatmul.mubr.f32.gmra.mrb[0].mxu0 %v498
        %v597 = vpop.f32.mrb[0].mxu0
        %v598 = vadd.f32 %v468, %v597
        %v599 = vpop.f32.mrb[0].mxu0
        %600 = vmatprep.mubr.f32.mxu0 0.0
        %601 = vmatmul.mubr.f32.gmra.mrb[0].mxu0 %v501
        %v602 = vpop.f32.mrb[0].mxu0
        %v603 = vadd.f32 %v473, %v602
        %v604 = vpop.f32.mrb[0].mxu0
        %605 = vmatprep.mubr.f32.mxu0 0.0
        %606 = vmatmul.mubr.f32.gmra.mrb[0].mxu0 %v504
        %v607 = vpop.f32.mrb[0].mxu0
        %v608 = vadd.f32 %v478, %v607
        %v609 = vpop.f32.mrb[0].mxu0
        %610 = vdwg.mxu0
        %v611 = vld [vmem:[%s326] sm:$0xff]
        %v612 = vld [vmem:[%s3] sm:$0xff]
        %v613 = vld [vmem:[%s3 + $0x8] sm:$0xff]
        %v614 = vld [vmem:[%s3 + $0x10] sm:$0xff]
        %v615 = vld [vmem:[%s3 + $0x18] sm:$0xff]
        %v616 = vld [vmem:[%s3 + $0x20] sm:$0xff]
        %v617 = vld [vmem:[%s3 + $0x28] sm:$0xff]
        %vm618 = vcmask 392192
        %v620 = vsel %vm618, %v611, 0
        %622 = vmatprep.subr.mxu0 0.0
        %623 = vmatpush1.msra.mxu0 %v612
        %624 = vmatprep.subr.mxu0 0.0
        %625 = vmatpush1.msra.mxu0 %v613
        %626 = vmatprep.subr.mxu0 0.0
        %627 = vmatpush1.msra.mxu0 %v614
        %628 = vmatprep.subr.mxu0 0.0
        %629 = vmatpush1.msra.mxu0 %v615
        %630 = vmatprep.subr.mxu0 0.0
        %631 = vmatpush1.msra.mxu0 %v616
        %632 = vmatprep.subr.mxu0 0.0
        %633 = vmatpush1.msra.mxu0 %v617
        %634 = vmatprep.subr.mxu0 0.0
        %635 = vmatpush1.msra.mxu0 0.0
        %636 = vmatprep.subr.mxu0 0.0
        %637 = vmatpush1.msra.mxu0 0.0
        %638 = vmatprep.subr.mxu0 0.0
        %639 = vmatpush1.msra.mxu0 0.0
        %640 = vmatprep.subr.mxu0 0.0
        %641 = vmatpush1.msra.mxu0 0.0
        %642 = vmatprep.subr.mxu0 0.0
        %643 = vmatpush1.msra.mxu0 0.0
        %644 = vmatprep.subr.mxu0 0.0
        %645 = vmatpush1.msra.mxu0 0.0
        %646 = vmatprep.subr.mxu0 0.0
        %647 = vmatpush1.msra.mxu0 0.0
        %648 = vmatprep.subr.mxu0 0.0
        %649 = vmatpush1.msra.mxu0 0.0
        %650 = vmatprep.subr.mxu0 0.0
        %651 = vmatpush1.msra.mxu0 0.0
        %652 = vmatprep.subr.mxu0 0.0
        %653 = vmatpush1.msra.mxu0 0.0
        %654 = vmatprep.subr.mxu0 0.0
        %655 = vmatpush1.msra.mxu0 0.0
        %656 = vmatprep.subr.mxu0 0.0
        %657 = vmatpush1.msra.mxu0 0.0
        %658 = vmatprep.subr.mxu0 0.0
        %659 = vmatpush1.msra.mxu0 0.0
        %660 = vmatprep.subr.mxu0 0.0
        %661 = vmatpush1.msra.mxu0 0.0
        %662 = vmatprep.subr.mxu0 0.0
        %663 = vmatpush1.msra.mxu0 0.0
        %664 = vmatprep.subr.mxu0 0.0
        %665 = vmatpush1.msra.mxu0 0.0
        %666 = vmatprep.subr.mxu0 0.0
        %667 = vmatpush1.msra.mxu0 0.0
        %668 = vmatprep.subr.mxu0 0.0
        %669 = vmatpush1.msra.mxu0 0.0
        %670 = vmatprep.subr.mxu0 0.0
        %671 = vmatpush1.msra.mxu0 0.0
        %672 = vmatprep.subr.mxu0 0.0
        %673 = vmatpush1.msra.mxu0 0.0
        %674 = vmatprep.subr.mxu0 0.0
        %675 = vmatpush1.msra.mxu0 0.0
        %676 = vmatprep.subr.mxu0 0.0
        %677 = vmatpush1.msra.mxu0 0.0
        %678 = vmatprep.subr.mxu0 0.0
        %679 = vmatpush1.msra.mxu0 0.0
        %680 = vmatprep.subr.mxu0 0.0
        %681 = vmatpush1.msra.mxu0 0.0
        %682 = vmatprep.subr.mxu0 0.0
        %683 = vmatpush1.msra.mxu0 0.0
        %684 = vmatprep.subr.mxu0 0.0
        %685 = vmatpush1.msra.mxu0 0.0
        %686 = vmatprep.mubr.f32.mxu0 0.0
        %687 = vmatmul.mubr.f32.gmra.mrb[0].mxu0 %v620
        %v688 = vpop.f32.mrb[0].mxu0
        %v689 = vadd.f32 0.0, %v688
        %v690 = vpop.f32.mrb[0].mxu0
        %691 = vdwg.mxu0
        %v693 = vcombine.high %v689, %v689
        %v695 = vunpack.c.l.s4 1966171168
        %v696 = vunpack.c.0.s8 %v695
        %v697 = vlaneseq
        %v698 = vshrl.u32 %v697, 7
        %v699 = vsub.s32 %v696, %v698
        %v700 = vrot.slane %v689, %v699
        %v702 = vunpack.c.l.s4 1966171168
        %v703 = vunpack.c.0.s8 %v702
        %v704 = vlaneseq
        %v705 = vshrl.u32 %v704, 7
        %v706 = vsub.s32 %v703, %v705
        %v707 = vrot.slane %v693, %v706
        %v708 = vcombine.high %v700, %v700
        %v709 = vcombine.high %v707, %v707
        %v711 = vunpack.c.l.s4 1966171168
        %v712 = vunpack.c.0.s8 %v711
        %v713 = vlaneseq
        %v714 = vshrl.u32 %v713, 7
        %v715 = vsub.s32 %v712, %v714
        %v716 = vrot.slane %v700, %v715
        %v718 = vunpack.c.l.s4 1966171168
        %v719 = vunpack.c.0.s8 %v718
        %v720 = vlaneseq
        %v721 = vshrl.u32 %v720, 7
        %v722 = vsub.s32 %v719, %v721
        %v723 = vrot.slane %v707, %v722
        %v725 = vunpack.c.l.s4 1966171168
        %v726 = vunpack.c.0.s8 %v725
        %v727 = vlaneseq
        %v728 = vshrl.u32 %v727, 7
        %v729 = vsub.s32 %v726, %v728
        %v730 = vrot.slane %v708, %v729
        %v732 = vunpack.c.l.s4 1966171168
        %v733 = vunpack.c.0.s8 %v732
        %v734 = vlaneseq
        %v735 = vshrl.u32 %v734, 7
        %v736 = vsub.s32 %v733, %v735
        %v737 = vrot.slane %v709, %v736
        %v738 = vcombine.high %v716, %v716
        %v739 = vcombine.high %v723, %v723
        %v740 = vcombine.high %v730, %v730
        %v741 = vcombine.high %v737, %v737
        %v742 = vlaneseq
        %v743 = vshrl.u32 %v742, 7
        %v744 = vsub.s32 0, %v743
        %v745 = vrot.slane %v716, %v744
        %v746 = vlaneseq
        %v747 = vshrl.u32 %v746, 7
        %v748 = vsub.s32 0, %v747
        %v749 = vrot.slane %v730, %v748
        %v750 = vlaneseq
        %v751 = vshrl.u32 %v750, 7
        %v752 = vsub.s32 0, %v751
        %v753 = vrot.slane %v738, %v752
        %v754 = vlaneseq
        %v755 = vshrl.u32 %v754, 7
        %v756 = vsub.s32 0, %v755
        %v757 = vrot.slane %v740, %v756
        %v758 = vlaneseq
        %v759 = vshrl.u32 %v758, 7
        %v760 = vsub.s32 0, %v759
        %v761 = vrot.slane %v723, %v760
        %v762 = vlaneseq
        %v763 = vshrl.u32 %v762, 7
        %v764 = vsub.s32 0, %v763
        %v765 = vrot.slane %v737, %v764
        %v766 = vlaneseq
        %v767 = vshrl.u32 %v766, 7
        %v768 = vsub.s32 0, %v767
        %v769 = vrot.slane %v739, %v768
        %v770 = vlaneseq
        %v771 = vshrl.u32 %v770, 7
        %v772 = vsub.s32 0, %v771
        %v773 = vrot.slane %v741, %v772
        %v782 = vadd.f32 %v573, %v745
        %v783 = vadd.f32 %v578, %v749
        %v784 = vadd.f32 %v583, %v753
        %v785 = vadd.f32 %v588, %v757
        %v786 = vadd.f32 %v593, %v761
        %v787 = vadd.f32 %v598, %v765
        %v788 = vadd.f32 %v603, %v769
        %v789 = vadd.f32 %v608, %v773
        %vm790 = vcmp.gt.f32.partialorder %v782, 0.0
        %vm791 = vcmp.gt.f32.partialorder %v783, 0.0
        %vm792 = vcmp.gt.f32.partialorder %v784, 0.0
        %vm793 = vcmp.gt.f32.partialorder %v785, 0.0
        %vm794 = vcmp.gt.f32.partialorder %v786, 0.0
        %vm795 = vcmp.gt.f32.partialorder %v787, 0.0
        %vm796 = vcmp.gt.f32.partialorder %v788, 0.0
        %vm797 = vcmp.gt.f32.partialorder %v789, 0.0
        %v798 = vmul.f32 %v782, 0.2
        %v799 = vmul.f32 %v783, 0.2
        %v800 = vmul.f32 %v784, 0.2
        %v801 = vmul.f32 %v785, 0.2
        %v802 = vmul.f32 %v786, 0.2
        %v803 = vmul.f32 %v787, 0.2
        %v804 = vmul.f32 %v788, 0.2
        %v805 = vmul.f32 %v789, 0.2
        %v806 = vsel %vm790, %v782, %v798
        %v807 = vsel %vm791, %v783, %v799
        %v808 = vsel %vm792, %v784, %v800
        %v809 = vsel %vm793, %v785, %v801
        %v810 = vsel %vm794, %v786, %v802
        %v811 = vsel %vm795, %v787, %v803
        %v812 = vsel %vm796, %v788, %v804
        %v813 = vsel %vm797, %v789, %v805
        %vm814 = vcmask 15360
        %v815 = vsel %vm814, %v806, -inf
        %v816 = vrot.slane %v815, 4
        %v817 = vmax.f32 %v815, %v816
        %v818 = vrot.slane %v817, 2
        %v819 = vmax.f32 %v817, %v818
        %v820 = vrot.slane %v819, 1
        %v821 = vmax.f32 %v819, %v820
        %v822 = vsel %vm814, %v807, -inf
        %v823 = vrot.slane %v822, 4
        %v824 = vmax.f32 %v822, %v823
        %v825 = vrot.slane %v824, 2
        %v826 = vmax.f32 %v824, %v825
        %v827 = vrot.slane %v826, 1
        %v828 = vmax.f32 %v826, %v827
        %v829 = vsel %vm814, %v808, -inf
        %v830 = vrot.slane %v829, 4
        %v831 = vmax.f32 %v829, %v830
        %v832 = vrot.slane %v831, 2
        %v833 = vmax.f32 %v831, %v832
        %v834 = vrot.slane %v833, 1
        %v835 = vmax.f32 %v833, %v834
        %v836 = vsel %vm814, %v809, -inf
        %v837 = vrot.slane %v836, 4
        %v838 = vmax.f32 %v836, %v837
        %v839 = vrot.slane %v838, 2
        %v840 = vmax.f32 %v838, %v839
        %v841 = vrot.slane %v840, 1
        %v842 = vmax.f32 %v840, %v841
        %v843 = vsel %vm814, %v810, -inf
        %v844 = vrot.slane %v843, 4
        %v845 = vmax.f32 %v843, %v844
        %v846 = vrot.slane %v845, 2
        %v847 = vmax.f32 %v845, %v846
        %v848 = vrot.slane %v847, 1
        %v849 = vmax.f32 %v847, %v848
        %v850 = vsel %vm814, %v811, -inf
        %v851 = vrot.slane %v850, 4
        %v852 = vmax.f32 %v850, %v851
        %v853 = vrot.slane %v852, 2
        %v854 = vmax.f32 %v852, %v853
        %v855 = vrot.slane %v854, 1
        %v856 = vmax.f32 %v854, %v855
        %v857 = vsel %vm814, %v812, -inf
        %v858 = vrot.slane %v857, 4
        %v859 = vmax.f32 %v857, %v858
        %v860 = vrot.slane %v859, 2
        %v861 = vmax.f32 %v859, %v860
        %v862 = vrot.slane %v861, 1
        %v863 = vmax.f32 %v861, %v862
        %v864 = vsel %vm814, %v813, -inf
        %v865 = vrot.slane %v864, 4
        %v866 = vmax.f32 %v864, %v865
        %v867 = vrot.slane %v866, 2
        %v868 = vmax.f32 %v866, %v867
        %v869 = vrot.slane %v868, 1
        %v870 = vmax.f32 %v868, %v869
        %v871 = vsub.f32 %v806, %v821
        %v872 = vsub.f32 %v807, %v828
        %v873 = vsub.f32 %v808, %v835
        %v874 = vsub.f32 %v809, %v842
        %v875 = vsub.f32 %v810, %v849
        %v876 = vsub.f32 %v811, %v856
        %v877 = vsub.f32 %v812, %v863
        %v878 = vsub.f32 %v813, %v870
        %v879 = vmul.f32 %v871, 1.442695
        %v880 = vpow.pop %v879
        %v881 = vmul.f32 %v872, 1.442695
        %v882 = vpow.pop %v881
        %v883 = vmul.f32 %v873, 1.442695
        %v884 = vpow.pop %v883
        %v885 = vmul.f32 %v874, 1.442695
        %v886 = vpow.pop %v885
        %v887 = vmul.f32 %v875, 1.442695
        %v888 = vpow.pop %v887
        %v889 = vmul.f32 %v876, 1.442695
        %v890 = vpow.pop %v889
        %v891 = vmul.f32 %v877, 1.442695
        %v892 = vpow.pop %v891
        %v893 = vmul.f32 %v878, 1.442695
        %v894 = vpow.pop %v893
        %v895 = vsel %vm814, %v880, 0.0
        %v896 = vrot.slane %v895, 4
        %v897 = vadd.f32 %v895, %v896
        %v898 = vrot.slane %v897, 2
        %v899 = vadd.f32 %v897, %v898
        %v900 = vrot.slane %v899, 1
        %v901 = vadd.f32 %v899, %v900
        %v902 = vsel %vm814, %v882, 0.0
        %v903 = vrot.slane %v902, 4
        %v904 = vadd.f32 %v902, %v903
        %v905 = vrot.slane %v904, 2
        %v906 = vadd.f32 %v904, %v905
        %v907 = vrot.slane %v906, 1
        %v908 = vadd.f32 %v906, %v907
        %v909 = vsel %vm814, %v884, 0.0
        %v910 = vrot.slane %v909, 4
        %v911 = vadd.f32 %v909, %v910
        %v912 = vrot.slane %v911, 2
        %v913 = vadd.f32 %v911, %v912
        %v914 = vrot.slane %v913, 1
        %v915 = vadd.f32 %v913, %v914
        %v916 = vsel %vm814, %v886, 0.0
        %v917 = vrot.slane %v916, 4
        %v918 = vadd.f32 %v916, %v917
        %v919 = vrot.slane %v918, 2
        %v920 = vadd.f32 %v918, %v919
        %v921 = vrot.slane %v920, 1
        %v922 = vadd.f32 %v920, %v921
        %v923 = vsel %vm814, %v888, 0.0
        %v924 = vrot.slane %v923, 4
        %v925 = vadd.f32 %v923, %v924
        %v926 = vrot.slane %v925, 2
        %v927 = vadd.f32 %v925, %v926
        %v928 = vrot.slane %v927, 1
        %v929 = vadd.f32 %v927, %v928
        %v930 = vsel %vm814, %v890, 0.0
        %v931 = vrot.slane %v930, 4
        %v932 = vadd.f32 %v930, %v931
        %v933 = vrot.slane %v932, 2
        %v934 = vadd.f32 %v932, %v933
        %v935 = vrot.slane %v934, 1
        %v936 = vadd.f32 %v934, %v935
        %v937 = vsel %vm814, %v892, 0.0
        %v938 = vrot.slane %v937, 4
        %v939 = vadd.f32 %v937, %v938
        %v940 = vrot.slane %v939, 2
        %v941 = vadd.f32 %v939, %v940
        %v942 = vrot.slane %v941, 1
        %v943 = vadd.f32 %v941, %v942
        %v944 = vsel %vm814, %v894, 0.0
        %v945 = vrot.slane %v944, 4
        %v946 = vadd.f32 %v944, %v945
        %v947 = vrot.slane %v946, 2
        %v948 = vadd.f32 %v946, %v947
        %v949 = vrot.slane %v948, 1
        %v950 = vadd.f32 %v948, %v949
        %v951 = vrcp.pop %v901
        %v952 = vrcp.pop %v908
        %v953 = vrcp.pop %v915
        %v954 = vrcp.pop %v922
        %v955 = vrcp.pop %v929
        %v956 = vrcp.pop %v936
        %v957 = vrcp.pop %v943
        %v958 = vrcp.pop %v950
        %v959 = vmul.f32 %v880, %v951
        %v960 = vmul.f32 %v882, %v952
        %v961 = vmul.f32 %v884, %v953
        %v962 = vmul.f32 %v886, %v954
        %v963 = vmul.f32 %v888, %v955
        %v964 = vmul.f32 %v890, %v956
        %v965 = vmul.f32 %v892, %v957
        %v966 = vmul.f32 %v894, %v958
        %v967 = vsel %vm814, %v959, 0.0
        %968 = vadd.xlane.f32.xlu0 %v967
        %v969 = vpop.xlane.xlu0 %968
        %v970 = vsel %vm814, %v960, 0.0
        %971 = vadd.xlane.f32.xlu0 %v970
        %v972 = vpop.xlane.xlu0 %971
        %v973 = vsel %vm814, %v961, 0.0
        %974 = vadd.xlane.f32.xlu0 %v973
        %v975 = vpop.xlane.xlu0 %974
        %v976 = vsel %vm814, %v962, 0.0
        %977 = vadd.xlane.f32.xlu0 %v976
        %v978 = vpop.xlane.xlu0 %977
        %v979 = vsel %vm814, %v963, 0.0
        %980 = vadd.xlane.f32.xlu0 %v979
        %v981 = vpop.xlane.xlu0 %980
        %v982 = vsel %vm814, %v964, 0.0
        %983 = vadd.xlane.f32.xlu0 %v982
        %v984 = vpop.xlane.xlu0 %983
        %v985 = vsel %vm814, %v965, 0.0
        %986 = vadd.xlane.f32.xlu0 %v985
        %v987 = vpop.xlane.xlu0 %986
        %v988 = vsel %vm814, %v966, 0.0
        %989 = vadd.xlane.f32.xlu0 %v988
        %v990 = vpop.xlane.xlu0 %989
        %v991 = vmul.f32 %v969, 0.5
        %v992 = vmul.f32 %v972, 0.5
        %v993 = vmul.f32 %v975, 0.5
        %v994 = vmul.f32 %v978, 0.5
        %v995 = vmul.f32 %v981, 0.5
        %v996 = vmul.f32 %v984, 0.5
        %v997 = vmul.f32 %v987, 0.5
        %v998 = vmul.f32 %v990, 0.5
        %v999 = vmul.f32 %v991, %v329
        %v1000 = vmul.f32 %v992, %v330
        %v1001 = vmul.f32 %v993, %v331
        %v1002 = vmul.f32 %v994, %v332
        %v1003 = vmul.f32 %v995, %v333
        %v1004 = vmul.f32 %v996, %v334
        %v1005 = vmul.f32 %v997, %v335
        %v1006 = vmul.f32 %v998, %v336
        %v1007 = vsel %vm481, %v999, 0.0
        %v1008 = vrot.slane %v1007, 4
        %v1009 = vadd.f32 %v1007, %v1008
        %v1010 = vrot.slane %v1009, 2
        %v1011 = vadd.f32 %v1009, %v1010
        %v1012 = vrot.slane %v1011, 1
        %v1013 = vadd.f32 %v1011, %v1012
        %v1014 = vsel %vm481, %v1000, 0.0
        %v1015 = vrot.slane %v1014, 4
        %v1016 = vadd.f32 %v1014, %v1015
        %v1017 = vrot.slane %v1016, 2
        %v1018 = vadd.f32 %v1016, %v1017
        %v1019 = vrot.slane %v1018, 1
        %v1020 = vadd.f32 %v1018, %v1019
        %v1021 = vsel %vm481, %v1001, 0.0
        %v1022 = vrot.slane %v1021, 4
        %v1023 = vadd.f32 %v1021, %v1022
        %v1024 = vrot.slane %v1023, 2
        %v1025 = vadd.f32 %v1023, %v1024
        %v1026 = vrot.slane %v1025, 1
        %v1027 = vadd.f32 %v1025, %v1026
        %v1028 = vsel %vm481, %v1002, 0.0
        %v1029 = vrot.slane %v1028, 4
        %v1030 = vadd.f32 %v1028, %v1029
        %v1031 = vrot.slane %v1030, 2
        %v1032 = vadd.f32 %v1030, %v1031
        %v1033 = vrot.slane %v1032, 1
        %v1034 = vadd.f32 %v1032, %v1033
        %v1035 = vsel %vm481, %v1003, 0.0
        %v1036 = vrot.slane %v1035, 4
        %v1037 = vadd.f32 %v1035, %v1036
        %v1038 = vrot.slane %v1037, 2
        %v1039 = vadd.f32 %v1037, %v1038
        %v1040 = vrot.slane %v1039, 1
        %v1041 = vadd.f32 %v1039, %v1040
        %v1042 = vsel %vm481, %v1004, 0.0
        %v1043 = vrot.slane %v1042, 4
        %v1044 = vadd.f32 %v1042, %v1043
        %v1045 = vrot.slane %v1044, 2
        %v1046 = vadd.f32 %v1044, %v1045
        %v1047 = vrot.slane %v1046, 1
        %v1048 = vadd.f32 %v1046, %v1047
        %v1049 = vsel %vm481, %v1005, 0.0
        %v1050 = vrot.slane %v1049, 4
        %v1051 = vadd.f32 %v1049, %v1050
        %v1052 = vrot.slane %v1051, 2
        %v1053 = vadd.f32 %v1051, %v1052
        %v1054 = vrot.slane %v1053, 1
        %v1055 = vadd.f32 %v1053, %v1054
        %v1056 = vsel %vm481, %v1006, 0.0
        %v1057 = vrot.slane %v1056, 4
        %v1058 = vadd.f32 %v1056, %v1057
        %v1059 = vrot.slane %v1058, 2
        %v1060 = vadd.f32 %v1058, %v1059
        %v1061 = vrot.slane %v1060, 1
        %v1062 = vadd.f32 %v1060, %v1061
        %v1063 = vxor.u32 %v1013, 2147483648
        %v1064 = vxor.u32 %v1020, 2147483648
        %v1065 = vxor.u32 %v1027, 2147483648
        %v1066 = vxor.u32 %v1034, 2147483648
        %v1067 = vxor.u32 %v1041, 2147483648
        %v1068 = vxor.u32 %v1048, 2147483648
        %v1069 = vxor.u32 %v1055, 2147483648
        %v1070 = vxor.u32 %v1062, 2147483648
        %v1071 = vmul.f32 %v1063, 1.442695
        %v1072 = vpow.pop %v1071
        %v1073 = vmul.f32 %v1064, 1.442695
        %v1074 = vpow.pop %v1073
        %v1075 = vmul.f32 %v1065, 1.442695
        %v1076 = vpow.pop %v1075
        %v1077 = vmul.f32 %v1066, 1.442695
        %v1078 = vpow.pop %v1077
        %v1079 = vmul.f32 %v1067, 1.442695
        %v1080 = vpow.pop %v1079
        %v1081 = vmul.f32 %v1068, 1.442695
        %v1082 = vpow.pop %v1081
        %v1083 = vmul.f32 %v1069, 1.442695
        %v1084 = vpow.pop %v1083
        %v1085 = vmul.f32 %v1070, 1.442695
        %v1086 = vpow.pop %v1085
        %v1087 = vadd.f32 %v1072, 1.0
        %v1088 = vadd.f32 %v1074, 1.0
        %v1089 = vadd.f32 %v1076, 1.0
        %v1090 = vadd.f32 %v1078, 1.0
        %v1091 = vadd.f32 %v1080, 1.0
        %v1092 = vadd.f32 %v1082, 1.0
        %v1093 = vadd.f32 %v1084, 1.0
        %v1094 = vadd.f32 %v1086, 1.0
        %v1095 = vrcp.pop %v1087
        %v1096 = vmul.f32 1.0, %v1095
        %v1097 = vrcp.pop %v1088
        %v1098 = vmul.f32 1.0, %v1097
        %v1099 = vrcp.pop %v1089
        %v1100 = vmul.f32 1.0, %v1099
        %v1101 = vrcp.pop %v1090
        %v1102 = vmul.f32 1.0, %v1101
        %v1103 = vrcp.pop %v1091
        %v1104 = vmul.f32 1.0, %v1103
        %v1105 = vrcp.pop %v1092
        %v1106 = vmul.f32 1.0, %v1105
        %v1107 = vrcp.pop %v1093
        %v1108 = vmul.f32 1.0, %v1107
        %v1109 = vrcp.pop %v1094
        %v1110 = vmul.f32 1.0, %v1109
        %vm1119 = vcmask 1041409
        %v1120 = vsel %vm1119, %v1098, %v1096
        %vm1121 = vcmask 1042434
        %v1122 = vsel %vm1121, %v1100, %v1120
        %vm1123 = vcmask 1043459
        %v1124 = vsel %vm1123, %v1102, %v1122
        %vm1125 = vcmask 1044484
        %v1126 = vsel %vm1125, %v1104, %v1124
        %vm1127 = vcmask 1045509
        %v1128 = vsel %vm1127, %v1106, %v1126
        %vm1129 = vcmask 1046534
        %v1130 = vsel %vm1129, %v1108, %v1128
        %vm1131 = vcmask 1047559
        %v1132 = vsel %vm1131, %v1110, %v1130
        %1134 = vst.msk [vmem:[%s322] sm:$0xff] %vm481, %v1132
        %s1135 = sand.u32 %s175, 1
        %s1136 = scalar_lea.sflag [#allocation4], %s1135
        %s1137 = sand.u32 %s175, 1
        %s1138 = smul.addr %s1137, 8
        %s1139 = scalar_lea.vmem [#allocation7], %s1138
        // Predicated region
        $region53: #{tpu_custom_call.1} parent=43 // pred_check
          %p1140 = pneg %p185
        $region54: #{tpu_custom_call.1} parent=43 // pred_check_branch
          %1142 = sbr.rel (%p1140) target = $region56
        $region55: #{tpu_custom_call.1} parent=43 // pred_region
          %s1144 = ssub.s32 128, 128
          %1145 = vsyncadd %s1136, %s1144
          %s1146 = smul.addr %s26, 128
          %s1147 = scalar_lea.hbm %s6, %s1146
          %s1149 = sshll.u32 %s1139, 4
          %s1150 = int_to_ptr.vmem [resolvable:$true] %s1149
          %1152 = dma.vmem_to_hbm [thread:$0]  %s1150, 128, %s1147, %s1136
        $region56: #{tpu_custom_call.1} parent=43 // pred_fallthru
          _
      $region44: #{tpu_custom_call.1} parent=5 // pred_fallthru
        _
      %p1153 = scmp.le.s32.totalorder 2, %s21
      // Predicated region
      $region57: #{tpu_custom_call.1} parent=5 // pred_check
        %p1154 = pneg %p1153
      $region58: #{tpu_custom_call.1} parent=5 // pred_check_branch
        %1156 = sbr.rel (%p1154) target = $region60
      $region59: #{tpu_custom_call.1} parent=5 // pred_region
        %s1157 = ssub.s32 %s21, 2
        // Predicated region
        $region61: #{tpu_custom_call.1} parent=59 // pred_check
          %p1158 = pneg %p191
        $region62: #{tpu_custom_call.1} parent=59 // pred_check_branch
          %1160 = sbr.rel (%p1158) target = $region64
        $region63: #{tpu_custom_call.1} parent=59 // pred_region
          %s1161 = sand.u32 %s176, 1
          %s1162 = scalar_lea.sflag [#allocation4], %s1161
          %s1163 = sand.u32 %s176, 1
          %s1164 = smul.addr %s1163, 8
          %s1165 = scalar_lea.vmem [#allocation7], %s1164
          %1166 = dma.done %s1162, 128
        $region64: #{tpu_custom_call.1} parent=59 // pred_fallthru
          _
      $region60: #{tpu_custom_call.1} parent=5 // pred_fallthru
        _
    $region6: #{tpu_custom_call.1} parent=1 // loop_footer
      %s25 = sadd.s32 1, %s21
    $region7: #{tpu_custom_call.1} parent=1 // loop_footer_branch
      %20 = sbr.rel target = $region3
    $region8: #{tpu_custom_call.1} parent=1 // loop_exit
      _
    %1167 = vsyncpa [#allocation3], 1
    %s1168 = scalar_lea.sflag [#allocation3], 1
    %1169 = vsyncpa %s1168, 1
    %1170 = vsyncpa [#allocation6], 1
    %s1171 = scalar_lea.sflag [#allocation6], 1
    %1172 = vsyncpa %s1171, 1
    %1173 = vsyncpa [#allocation4], 1
    %s1174 = scalar_lea.sflag [#allocation4], 1
    %1175 = vsyncpa %s1174, 1

</llo_original>
